<compile_context>
chip_gen: v6e
topology: v6e:2x2x1
jax: 0.10.0
libtpu: 0.0.40
codegen_flags: <defaults>
</compile_context>

<pallas_src>
import functools

import jax
import jax.numpy as jnp
from jax.experimental import pallas as pl
from jax.experimental.pallas import tpu as pltpu


def _round_up(x: int, m: int) -> int:
    return ((x + m - 1) // m) * m


def _fused_dims(state_dim: int, action_dim: int, hidden_dim: int):
    """Row offsets of each fused weight block inside the packed weight buffer."""
    fh = max(_round_up(2 * hidden_dim, 128), 128)   # fused (padded) hidden width
    off_ws = 0
    off_wa = _round_up(state_dim, 8)
    off_w2 = off_wa + _round_up(action_dim, 8)
    off_w3 = off_w2 + fh
    off_wq = off_w3 + fh
    total_rows = off_wq + fh
    offs = dict(off_ws=off_ws, off_wa=off_wa, off_w2=off_w2,
                off_w3=off_w3, off_wq=off_wq)
    return fh, offs, total_rows


def _critic_kernel(state_ref, action_ref, w_ref, b_ref, out_ref, *,
                   state_dim, action_dim, fh,
                   off_ws, off_wa, off_w2, off_w3, off_wq):
    """One batch tile: fused twin-Q MLP, all operands resident in VMEM."""
    x_s = state_ref[...]            # (TB, state_dim)
    x_a = action_ref[...]           # (TB, action_dim)

    # ---- layer 1 (fused [Q1 | Q2]) --------------------------------------
    # state part on the MXU:
    h = jnp.dot(x_s, w_ref[pl.ds(off_ws, state_dim), :],
                preferred_element_type=jnp.float32)
    # action part: K == action_dim is tiny (typically 1) -> VPU broadcast-accumulate
    # instead of a nearly-empty MXU pass.
    for a in range(action_dim):
        h = h + x_a[:, a:a + 1] * w_ref[pl.ds(off_wa + a, 1), :]
    h = jnp.maximum(h + b_ref[0:1, :], 0.0)

    # ---- layers 2 & 3: block-diagonal fused (both heads in one MXU pass) --
    h = jnp.maximum(
        jnp.dot(h, w_ref[pl.ds(off_w2, fh), :],
                preferred_element_type=jnp.float32) + b_ref[1:2, :], 0.0)
    h = jnp.maximum(
        jnp.dot(h, w_ref[pl.ds(off_w3, fh), :],
                preferred_element_type=jnp.float32) + b_ref[2:3, :], 0.0)

    # ---- fused head: q1 -> lane 0, q2 -> lane 1; lane-dense store ---------
    out_ref[...] = (
        jnp.dot(h, w_ref[pl.ds(off_wq, fh), :],
                preferred_element_type=jnp.float32) + b_ref[3:4, :]
    ).astype(out_ref.dtype)


def make_critic_forward(state_dim: int, action_dim: int, hidden_dim: int,
                        *, block_batch: int = 128):
    """Returns a jitted forward(state, action, w_pack, b_pack) -> (q1, q2)."""
    fh, offs, _ = _fused_dims(state_dim, action_dim, hidden_dim)
    kernel = functools.partial(_critic_kernel, state_dim=state_dim,
                               action_dim=action_dim, fh=fh, **offs)

    @jax.jit
    def forward(state, action, w_pack, b_pack):
        batch = state.shape[0]
        tb = min(block_batch, batch)
        grid = (pl.cdiv(batch, tb),)

        out = pl.pallas_call(
            kernel,
            out_shape=jax.ShapeDtypeStruct((batch, fh), jnp.float32),
            grid=grid,
            in_specs=[
                pl.BlockSpec((tb, state_dim), lambda i: (i, 0)),
                pl.BlockSpec((tb, action_dim), lambda i: (i, 0)),
                # weights/biases: constant block index -> fetched once, VMEM resident
                pl.BlockSpec(w_pack.shape, lambda i: (0, 0)),
                pl.BlockSpec(b_pack.shape, lambda i: (0, 0)),
            ],
            out_specs=pl.BlockSpec((tb, fh), lambda i: (i, 0)),
            compiler_params=pltpu.CompilerParams(
                dimension_semantics=("parallel",)),
        )(state, action, w_pack, b_pack)

        # q1 lives in lane 0, q2 in lane 1 of the lane-dense output slab.
        return out[:, 0:1], out[:, 1:2]

    return forward


def init_params(key, state_dim, action_dim, hidden_dim):
    """PyTorch-nn.Linear-style init; weights stored transposed as (in, out)."""
    in_dim = state_dim + action_dim
    dims = [
        ("w1", "b1", in_dim, hidden_dim),
        ("w2", "b2", hidden_dim, hidden_dim),
        ("w3", "b3", hidden_dim, hidden_dim),
        ("wq1", "bq1", hidden_dim, 1),
        ("w4", "b4", in_dim, hidden_dim),
        ("w5", "b5", hidden_dim, hidden_dim),
        ("w6", "b6", hidden_dim, hidden_dim),
        ("wq2", "bq2", hidden_dim, 1),
    ]
    params = {}
    for wname, bname, fan_in, fan_out in dims:
        key, kw, kb = jax.random.split(key, 3)
        bound = 1.0 / jnp.sqrt(jnp.float32(fan_in))
        params[wname] = jax.random.uniform(
            kw, (fan_in, fan_out), jnp.float32, -bound, bound)
        params[bname] = jax.random.uniform(
            kb, (1, fan_out), jnp.float32, -bound, bound)
    return params


def pack_params(params, state_dim, action_dim, hidden_dim):
    """Fuse the twin heads into one block-diagonal, tile-aligned weight/bias buffer."""
    h = hidden_dim
    fh, offs, total_rows = _fused_dims(state_dim, action_dim, hidden_dim)
    ws, wa, w2, w3, wq = (offs["off_ws"], offs["off_wa"], offs["off_w2"],
                          offs["off_w3"], offs["off_wq"])

    w = jnp.zeros((total_rows, fh), jnp.float32)
    # layer 1: [w1 | w4] along fused hidden; split rows into state / action parts
    w = w.at[ws:ws + state_dim, 0:h].set(params["w1"][:state_dim, :])
    w = w.at[ws:ws + state_dim, h:2 * h].set(params["w4"][:state_dim, :])
    w = w.at[wa:wa + action_dim, 0:h].set(params["w1"][state_dim:, :])
    w = w.at[wa:wa + action_dim, h:2 * h].set(params["w4"][state_dim:, :])
    # layers 2/3: block diagonal
    w = w.at[w2:w2 + h, 0:h].set(params["w2"])
    w = w.at[w2 + h:w2 + 2 * h, h:2 * h].set(params["w5"])
    w = w.at[w3:w3 + h, 0:h].set(params["w3"])
    w = w.at[w3 + h:w3 + 2 * h, h:2 * h].set(params["w6"])
    # head: q1 -> lane 0, q2 -> lane 1
    w = w.at[wq:wq + h, 0:1].set(params["wq1"])
    w = w.at[wq + h:wq + 2 * h, 1:2].set(params["wq2"])

    b = jnp.zeros((8, fh), jnp.float32)
    b = b.at[0, 0:h].set(params["b1"][0]).at[0, h:2 * h].set(params["b4"][0])
    b = b.at[1, 0:h].set(params["b2"][0]).at[1, h:2 * h].set(params["b5"][0])
    b = b.at[2, 0:h].set(params["b3"][0]).at[2, h:2 * h].set(params["b6"][0])
    b = b.at[3, 0].set(params["bq1"][0, 0]).at[3, 1].set(params["bq2"][0, 0])
    return w, b


def critic_reference(state, action, params):
    """Pure-JAX reference of the PyTorch forward."""
    sa = jnp.concatenate([state, action], axis=1)

    def head(w_a, b_a, w_b, b_b, w_c, b_c, w_q, b_q):
        x = jax.nn.relu(sa @ w_a + b_a)
        x = jax.nn.relu(x @ w_b + b_b)
        x = jax.nn.relu(x @ w_c + b_c)
        return x @ w_q + b_q

    q1 = head(params["w1"], params["b1"], params["w2"], params["b2"],
              params["w3"], params["b3"], params["wq1"], params["bq1"])
    q2 = head(params["w4"], params["b4"], params["w5"], params["b5"],
              params["w6"], params["b6"], params["wq2"], params["bq2"])
    return q1, q2


if __name__ == "__main__":
    # TODO(synk): the PyTorch forward's runtime state-dim mismatch warning /
    # truncate / zero-pad branch is host-side control flow and is not replicated.
    STATE_DIM = 16
    ACTION_DIM = 1
    HIDDEN_DIM = 32
    BATCH = 8

    key = jax.random.PRNGKey(0)
    key, k_state, k_action, k_params = jax.random.split(key, 4)

    state = jax.random.normal(k_state, (BATCH, STATE_DIM), jnp.float32)
    action = jax.random.normal(k_action, (BATCH, ACTION_DIM), jnp.float32)
    params = init_params(k_params, STATE_DIM, ACTION_DIM, HIDDEN_DIM)

    # Pack once (outside the hot forward path).
    w_pack, b_pack = pack_params(params, STATE_DIM, ACTION_DIM, HIDDEN_DIM)
    critic_forward = make_critic_forward(STATE_DIM, ACTION_DIM, HIDDEN_DIM)

    q1, q2 = critic_forward(state, action, w_pack, b_pack)
    q1, q2 = jax.block_until_ready((q1, q2))

    # Correctness check against a pure-JAX reference implementation.
    q1_ref, q2_ref = critic_reference(state, action, params)
    assert q1.shape == (BATCH, 1) and q2.shape == (BATCH, 1)
    assert jnp.allclose(q1, q1_ref, atol=1e-4, rtol=1e-4)
    assert jnp.allclose(q2, q2_ref, atol=1e-4, rtol=1e-4)

    print("KERNEL_OK")
</pallas_src>

<mosaic_0001>
module attributes {stable_mosaic.version = 11 : i64} {
  func.func @_critic_kernel(%arg0: i32, %arg1: memref<8x16xf32, #tpu.memory_space<vmem>>, %arg2: memref<8x1xf32, #tpu.memory_space<vmem>>, %arg3: memref<408x128xf32, #tpu.memory_space<vmem>>, %arg4: memref<8x128xf32, #tpu.memory_space<vmem>>, %arg5: memref<8x128xf32, #tpu.memory_space<vmem>>) attributes {dimension_semantics = [#tpu.dimension_semantics<parallel>], iteration_bounds = array<i64: 1>, scalar_prefetch = 0 : i64, scratch_operands = 0 : i64, tpu.core_type = #tpu.core_type<tc>, window_params = [{transform_indices = @transform_0, window_bounds = array<i64: 8, 16>}, {transform_indices = @transform_1, window_bounds = array<i64: 8, 1>}, {pipeline_mode = #tpu.pipeline_mode<synchronous>, transform_indices = @transform_2, window_bounds = array<i64: 408, 128>}, {pipeline_mode = #tpu.pipeline_mode<synchronous>, transform_indices = @transform_3, window_bounds = array<i64: 8, 128>}, {transform_indices = @transform_4, window_bounds = array<i64: 8, 128>}]} {
    %c0 = arith.constant 0 : index
    %c0_0 = arith.constant 0 : index
    %0 = vector.load %arg1[%c0, %c0_0] : memref<8x16xf32, #tpu.memory_space<vmem>>, vector<8x16xf32>
    %c0_1 = arith.constant 0 : index
    %c0_2 = arith.constant 0 : index
    %1 = vector.load %arg2[%c0_1, %c0_2] : memref<8x1xf32, #tpu.memory_space<vmem>>, vector<8x1xf32>
    %c0_3 = arith.constant 0 : index
    %c0_4 = arith.constant 0 : index
    %2 = vector.load %arg3[%c0_3, %c0_4] : memref<408x128xf32, #tpu.memory_space<vmem>>, vector<16x128xf32>
    %cst = arith.constant dense<0.000000e+00> : vector<8x128xf32>
    %3 = tpu.matmul %0, %2, %cst {dimension_numbers = #tpu.dot_dimension_numbers<[1], [0], [0], [1], [0, 0, 1, 1], [], []>} : vector<8x16xf32>, vector<16x128xf32>, vector<8x128xf32> -> vector<8x128xf32>
    %c16 = arith.constant 16 : index
    %c0_5 = arith.constant 0 : index
    %4 = vector.load %arg3[%c16, %c0_5] : memref<408x128xf32, #tpu.memory_space<vmem>>, vector<1x128xf32>
    %5 = vector.broadcast %1 : vector<8x1xf32> to vector<8x128xf32>
    %6 = vector.broadcast %4 : vector<1x128xf32> to vector<8x128xf32>
    %7 = arith.mulf %5, %6 : vector<8x128xf32>
    %8 = arith.addf %3, %7 : vector<8x128xf32>
    %c0_6 = arith.constant 0 : index
    %c0_7 = arith.constant 0 : index
    %9 = vector.load %arg4[%c0_6, %c0_7] : memref<8x128xf32, #tpu.memory_space<vmem>>, vector<1x128xf32>
    %10 = vector.broadcast %9 : vector<1x128xf32> to vector<8x128xf32>
    %11 = arith.addf %8, %10 : vector<8x128xf32>
    %cst_8 = arith.constant 0.000000e+00 : f32
    %12 = vector.broadcast %cst_8 : f32 to vector<8x128xf32>
    %13 = arith.maximumf %11, %12 : vector<8x128xf32>
    %c24 = arith.constant 24 : index
    %c0_9 = arith.constant 0 : index
    %14 = vector.load %arg3[%c24, %c0_9] : memref<408x128xf32, #tpu.memory_space<vmem>>, vector<128x128xf32>
    %cst_10 = arith.constant dense<0.000000e+00> : vector<8x128xf32>
    %15 = tpu.matmul %13, %14, %cst_10 {dimension_numbers = #tpu.dot_dimension_numbers<[1], [0], [0], [1], [0, 0, 1, 1], [], []>} : vector<8x128xf32>, vector<128x128xf32>, vector<8x128xf32> -> vector<8x128xf32>
    %c1 = arith.constant 1 : index
    %c0_11 = arith.constant 0 : index
    %16 = vector.load %arg4[%c1, %c0_11] : memref<8x128xf32, #tpu.memory_space<vmem>>, vector<1x128xf32>
    %17 = vector.broadcast %16 : vector<1x128xf32> to vector<8x128xf32>
    %18 = arith.addf %15, %17 : vector<8x128xf32>
    %cst_12 = arith.constant 0.000000e+00 : f32
    %19 = vector.broadcast %cst_12 : f32 to vector<8x128xf32>
    %20 = arith.maximumf %18, %19 : vector<8x128xf32>
    %c152 = arith.constant 152 : index
    %c0_13 = arith.constant 0 : index
    %21 = vector.load %arg3[%c152, %c0_13] : memref<408x128xf32, #tpu.memory_space<vmem>>, vector<128x128xf32>
    %cst_14 = arith.constant dense<0.000000e+00> : vector<8x128xf32>
    %22 = tpu.matmul %20, %21, %cst_14 {dimension_numbers = #tpu.dot_dimension_numbers<[1], [0], [0], [1], [0, 0, 1, 1], [], []>} : vector<8x128xf32>, vector<128x128xf32>, vector<8x128xf32> -> vector<8x128xf32>
    %c2 = arith.constant 2 : index
    %c0_15 = arith.constant 0 : index
    %23 = vector.load %arg4[%c2, %c0_15] : memref<8x128xf32, #tpu.memory_space<vmem>>, vector<1x128xf32>
    %24 = vector.broadcast %23 : vector<1x128xf32> to vector<8x128xf32>
    %25 = arith.addf %22, %24 : vector<8x128xf32>
    %cst_16 = arith.constant 0.000000e+00 : f32
    %26 = vector.broadcast %cst_16 : f32 to vector<8x128xf32>
    %27 = arith.maximumf %25, %26 : vector<8x128xf32>
    %c280 = arith.constant 280 : index
    %c0_17 = arith.constant 0 : index
    %28 = vector.load %arg3[%c280, %c0_17] : memref<408x128xf32, #tpu.memory_space<vmem>>, vector<128x128xf32>
    %cst_18 = arith.constant dense<0.000000e+00> : vector<8x128xf32>
    %29 = tpu.matmul %27, %28, %cst_18 {dimension_numbers = #tpu.dot_dimension_numbers<[1], [0], [0], [1], [0, 0, 1, 1], [], []>} : vector<8x128xf32>, vector<128x128xf32>, vector<8x128xf32> -> vector<8x128xf32>
    %c3 = arith.constant 3 : index
    %c0_19 = arith.constant 0 : index
    %30 = vector.load %arg4[%c3, %c0_19] : memref<8x128xf32, #tpu.memory_space<vmem>>, vector<1x128xf32>
    %31 = vector.broadcast %30 : vector<1x128xf32> to vector<8x128xf32>
    %32 = arith.addf %29, %31 : vector<8x128xf32>
    %c0_20 = arith.constant 0 : index
    %c0_21 = arith.constant 0 : index
    %33 = vector.load %arg5[%c0_20, %c0_21] : memref<8x128xf32, #tpu.memory_space<vmem>>, vector<8x128xf32>
    tpu.vector_store %arg5[%c0_20, %c0_21], %32 {strides = array<i32>} : memref<8x128xf32, #tpu.memory_space<vmem>>, vector<8x128xf32>,
    return
  }
  func.func @transform_0(%arg0: i32) -> (i32, i32) {
    %c0_i32 = arith.constant 0 : i32
    %c0_i32_0 = arith.constant 0 : i32
    return %arg0, %c0_i32 : i32, i32
  }
  func.func @transform_1(%arg0: i32) -> (i32, i32) {
    %c0_i32 = arith.constant 0 : i32
    %c0_i32_0 = arith.constant 0 : i32
    return %arg0, %c0_i32 : i32, i32
  }
  func.func @transform_2(%arg0: i32) -> (i32, i32) {
    %c0_i32 = arith.constant 0 : i32
    %c0_i32_0 = arith.constant 0 : i32
    %c0_i32_1 = arith.constant 0 : i32
    return %c0_i32, %c0_i32_0 : i32, i32
  }
  func.func @transform_3(%arg0: i32) -> (i32, i32) {
    %c0_i32 = arith.constant 0 : i32
    %c0_i32_0 = arith.constant 0 : i32
    %c0_i32_1 = arith.constant 0 : i32
    return %c0_i32, %c0_i32_0 : i32, i32
  }
  func.func @transform_4(%arg0: i32) -> (i32, i32) {
    %c0_i32 = arith.constant 0 : i32
    %c0_i32_0 = arith.constant 0 : i32
    return %arg0, %c0_i32 : i32, i32
  }
}

</mosaic_0001>

<llo_original>
// kernel: forward.1
$region0: #{forward.1}
  #allocation0 [shape = 'u32[]', space=smem, size = 0x4, offset = 0x4, fixed_abs, tag = 'smem constant byte address 0x4 - core index']
  #allocation1 [shape = 'u32[144,128]{1,0:T(1,128)}', space=vmem, size = 0x12000, scoped, tag = 'internal scratch']
  %s0 = inlined_call_operand.vmem [shape: f32[8,16], index: 0, kind: input, shape index: {}]
  %s1 = inlined_call_operand.vmem [shape: f32[8,1], index: 1, kind: input, shape index: {}]
  %s2 = inlined_call_operand.hbm [shape: f32[408,128], index: 2, kind: input, shape index: {}]
  %s3 = inlined_call_operand.hbm [shape: f32[8,128], index: 3, kind: input, shape index: {}]
  %s4 = inlined_call_operand.vmem [shape: f32[8,128], index: 4, kind: output, shape index: {}]
  %s5 = sld [smem:[#allocation0]]
  $region34: #{forward.1} parent=0
    _
  %s7 = ssub.s32 1, %s5
  %s8 = scalar_select 0, %s7, %s5
  $region1: #{forward.1} parent=0
    #allocation2 [shape = 'u8[208896]{0}', space=vmem, size = 0x33000, scoped, tag = 'input window, operand 2, single buffered']
    #allocation3 [shape = 's32[1]{0}', space=sflag, size = 0x4, scoped, tag = 'scoped memory for forward.1']
    #allocation4 [shape = 'u8[4096]{0}', space=vmem, size = 0x1000, scoped, tag = 'input window, operand 3, single buffered']
    #allocation5 [shape = 's32[1]{0}', space=sflag, size = 0x4, scoped, tag = 'scoped memory for forward.1']
    %9 = vsyncpa [#allocation3], 0
    %10 = vsyncpa [#allocation5], 0
    // Predicated region
    $region2: #{forward.1} parent=1 // pred_check
      _
    $region3: #{forward.1} parent=1 // pred_check_branch
      %12 = sbr.rel (0) target = $region5
    $region4: #{forward.1} parent=1 // pred_region
      _
    $region5: #{forward.1} parent=1 // pred_fallthru
      _
    // Predicated region
    $region6: #{forward.1} parent=1 // pred_check
      _
    $region7: #{forward.1} parent=1 // pred_check_branch
      %14 = sbr.rel (0) target = $region9
    $region8: #{forward.1} parent=1 // pred_region
      _
    $region9: #{forward.1} parent=1 // pred_fallthru
      _
    // Predicated region
    $region10: #{forward.1} parent=1 // pred_check
      _
    $region11: #{forward.1} parent=1 // pred_check_branch
      %16 = sbr.rel (0) target = $region13
    $region12: #{forward.1} parent=1 // pred_region
      %s18 = ssub.s32 6528, 6528
      %19 = vsyncadd [#allocation3], %s18
      %s20 = sshll.u32 [#allocation2], 4
      %s21 = int_to_ptr.vmem [resolvable:$true] %s20
      %26 = dma.hbm_to_vmem [thread:$0]  %s2, 6528, %s21, [#allocation3], 128, 128, 8
    $region13: #{forward.1} parent=1 // pred_fallthru
      _
    // Predicated region
    $region14: #{forward.1} parent=1 // pred_check
      _
    $region15: #{forward.1} parent=1 // pred_check_branch
      %28 = sbr.rel (0) target = $region17
    $region16: #{forward.1} parent=1 // pred_region
      %s30 = ssub.s32 128, 128
      %31 = vsyncadd [#allocation5], %s30
      %s33 = sshll.u32 [#allocation4], 4
      %s34 = int_to_ptr.vmem [resolvable:$true] %s33
      %36 = dma.hbm_to_vmem [thread:$0]  %s3, 128, %s34, [#allocation5]
    $region17: #{forward.1} parent=1 // pred_fallthru
      _
    // Predicated region
    $region18: #{forward.1} parent=1 // pred_check
      _
    $region19: #{forward.1} parent=1 // pred_check_branch
      %38 = sbr.rel (0) target = $region21
    $region20: #{forward.1} parent=1 // pred_region
      %39 = dma.done [#allocation3], 6528
    $region21: #{forward.1} parent=1 // pred_fallthru
      _
    // Predicated region
    $region22: #{forward.1} parent=1 // pred_check
      _
    $region23: #{forward.1} parent=1 // pred_check_branch
      %41 = sbr.rel (0) target = $region25
    $region24: #{forward.1} parent=1 // pred_region
      %42 = dma.done [#allocation5], 128
    $region25: #{forward.1} parent=1 // pred_fallthru
      _
    %v43 = vld [vmem:[%s0] sm:$0xff]
    %v44 = vld [vmem:[%s1] sm:$0xff]
    %v45 = vld [vmem:[#allocation2] sm:$0xff]
    %v46 = vld [vmem:[#allocation2 + $0x8] sm:$0xff]
    %v47 = vld [vmem:[#allocation2 + $0x10] sm:$0x1]
    %49 = vset.pattern.permute.xlu0 0
    %50 = vperm.xlu0 %49, %v44
    %v51 = vpop.permute.xlu0 %50
    %v53 = vlaneseq
    %v54 = vshrl.u32 %v53, 7
    %v55 = vsub.s32 0, %v54
    %v56 = vrot.slane %v47, %v55
    %v57 = vmul.f32 %v51, %v56
    %vm58 = vcmask 130048
    %v60 = vsel %vm58, %v43, 0
    %62 = vmatprep.subr.mxu0 0.0
    %63 = vmatpush1.msra.mxu0 0.0
    %64 = vmatprep.subr.mxu0 0.0
    %65 = vmatpush1.msra.mxu0 0.0
    %66 = vmatprep.subr.mxu0 0.0
    %67 = vmatpush1.msra.mxu0 0.0
    %68 = vmatprep.subr.mxu0 0.0
    %69 = vmatpush1.msra.mxu0 0.0
    %70 = vmatprep.subr.mxu0 0.0
    %71 = vmatpush1.msra.mxu0 0.0
    %72 = vmatprep.subr.mxu0 0.0
    %73 = vmatpush1.msra.mxu0 0.0
    %74 = vmatprep.subr.mxu0 0.0
    %75 = vmatpush1.msra.mxu0 0.0
    %76 = vmatprep.subr.mxu0 0.0
    %77 = vmatpush1.msra.mxu0 0.0
    %78 = vmatprep.subr.mxu0 0.0
    %79 = vmatpush1.msra.mxu0 0.0
    %80 = vmatprep.subr.mxu0 0.0
    %81 = vmatpush1.msra.mxu0 0.0
    %82 = vmatprep.subr.mxu0 0.0
    %83 = vmatpush1.msra.mxu0 0.0
    %84 = vmatprep.subr.mxu0 0.0
    %85 = vmatpush1.msra.mxu0 0.0
    %86 = vmatprep.subr.mxu0 0.0
    %87 = vmatpush1.msra.mxu0 0.0
    %88 = vmatprep.subr.mxu0 0.0
    %89 = vmatpush1.msra.mxu0 0.0
    %90 = vmatprep.subr.mxu0 0.0
    %91 = vmatpush1.msra.mxu0 %v46
    %92 = vmatprep.subr.mxu0 0.0
    %93 = vmatpush1.msra.mxu0 %v45
    %94 = vmatprep.subr.mxu0 0.0
    %95 = vmatpush2.msra.mxu0 0.0
    %96 = vmatprep.subr.mxu0 0.0
    %97 = vmatpush2.msra.mxu0 0.0
    %98 = vmatprep.subr.mxu0 0.0
    %99 = vmatpush2.msra.mxu0 0.0
    %100 = vmatprep.subr.mxu0 0.0
    %101 = vmatpush2.msra.mxu0 0.0
    %102 = vmatprep.subr.mxu0 0.0
    %103 = vmatpush2.msra.mxu0 0.0
    %104 = vmatprep.subr.mxu0 0.0
    %105 = vmatpush2.msra.mxu0 0.0
    %106 = vmatprep.subr.mxu0 0.0
    %107 = vmatpush2.msra.mxu0 0.0
    %108 = vmatprep.subr.mxu0 0.0
    %109 = vmatpush2.msra.mxu0 0.0
    %110 = vmatprep.subr.mxu0 0.0
    %111 = vmatpush2.msra.mxu0 0.0
    %112 = vmatprep.subr.mxu0 0.0
    %113 = vmatpush2.msra.mxu0 0.0
    %114 = vmatprep.subr.mxu0 0.0
    %115 = vmatpush2.msra.mxu0 0.0
    %116 = vmatprep.subr.mxu0 0.0
    %117 = vmatpush2.msra.mxu0 0.0
    %118 = vmatprep.subr.mxu0 0.0
    %119 = vmatpush2.msra.mxu0 0.0
    %120 = vmatprep.subr.mxu0 0.0
    %121 = vmatpush2.msra.mxu0 0.0
    %122 = vmatprep.subr.mxu0 0.0
    %123 = vmatpush2.msra.mxu0 0.0
    %124 = vmatprep.subr.mxu0 0.0
    %125 = vmatpush2.msra.mxu0 0.0
    %126 = vmatprep.mubr.f32.mxu0 0.0
    %127 = vmatmul.mubr.f32.gmra.mxu0 %v60
    %v128 = vpop.f32.mrf.mxu0
    %v129 = vadd.f32 %v57, %v128
    %v130 = vpop.f32.mrf.mxu0
    %131 = vdwg.mxu0
    %v132 = vld [vmem:[#allocation4] sm:$0x1]
    %v133 = vlaneseq
    %v134 = vshrl.u32 %v133, 7
    %v135 = vsub.s32 0, %v134
    %v136 = vrot.slane %v132, %v135
    %v137 = vadd.f32 %v129, %v136
    %v138 = vmax.f32 %v137, 0.0
    %v139 = vld [vmem:[#allocation2 + $0x18] sm:$0xff]
    %v140 = vld [vmem:[#allocation2 + $0x20] sm:$0xff]
    %v141 = vld [vmem:[#allocation2 + $0x28] sm:$0xff]
    %v142 = vld [vmem:[#allocation2 + $0x30] sm:$0xff]
    %v143 = vld [vmem:[#allocation2 + $0x38] sm:$0xff]
    %v144 = vld [vmem:[#allocation2 + $0x40] sm:$0xff]
    %v145 = vld [vmem:[#allocation2 + $0x48] sm:$0xff]
    %v146 = vld [vmem:[#allocation2 + $0x50] sm:$0xff]
    %v147 = vld [vmem:[#allocation2 + $0x58] sm:$0xff]
    %v148 = vld [vmem:[#allocation2 + $0x60] sm:$0xff]
    %v149 = vld [vmem:[#allocation2 + $0x68] sm:$0xff]
    %v150 = vld [vmem:[#allocation2 + $0x70] sm:$0xff]
    %v151 = vld [vmem:[#allocation2 + $0x78] sm:$0xff]
    %v152 = vld [vmem:[#allocation2 + $0x80] sm:$0xff]
    %v153 = vld [vmem:[#allocation2 + $0x88] sm:$0xff]
    %v154 = vld [vmem:[#allocation2 + $0x90] sm:$0xff]
    %v155 = vld [vmem:[#allocation4 + $0x1] sm:$0x1]
    %v156 = vlaneseq
    %v157 = vshrl.u32 %v156, 7
    %v158 = vsub.s32 0, %v157
    %v159 = vrot.slane %v155, %v158
    %160 = vmatprep.subr.mxu0 0.0
    %161 = vmatpush1.msra.mxu0 %v154
    %162 = vmatprep.subr.mxu0 0.0
    %163 = vmatpush1.msra.mxu0 %v153
    %164 = vmatprep.subr.mxu0 0.0
    %165 = vmatpush1.msra.mxu0 %v152
    %166 = vmatprep.subr.mxu0 0.0
    %167 = vmatpush1.msra.mxu0 %v151
    %168 = vmatprep.subr.mxu0 0.0
    %169 = vmatpush1.msra.mxu0 %v150
    %170 = vmatprep.subr.mxu0 0.0
    %171 = vmatpush1.msra.mxu0 %v149
    %172 = vmatprep.subr.mxu0 0.0
    %173 = vmatpush1.msra.mxu0 %v148
    %174 = vmatprep.subr.mxu0 0.0
    %175 = vmatpush1.msra.mxu0 %v147
    %176 = vmatprep.subr.mxu0 0.0
    %177 = vmatpush1.msra.mxu0 %v146
    %178 = vmatprep.subr.mxu0 0.0
    %179 = vmatpush1.msra.mxu0 %v145
    %180 = vmatprep.subr.mxu0 0.0
    %181 = vmatpush1.msra.mxu0 %v144
    %182 = vmatprep.subr.mxu0 0.0
    %183 = vmatpush1.msra.mxu0 %v143
    %184 = vmatprep.subr.mxu0 0.0
    %185 = vmatpush1.msra.mxu0 %v142
    %186 = vmatprep.subr.mxu0 0.0
    %187 = vmatpush1.msra.mxu0 %v141
    %188 = vmatprep.subr.mxu0 0.0
    %189 = vmatpush1.msra.mxu0 %v140
    %190 = vmatprep.subr.mxu0 0.0
    %191 = vmatpush1.msra.mxu0 %v139
    %192 = vmatprep.subr.mxu0 0.0
    %193 = vmatpush2.msra.mxu0 0.0
    %194 = vmatprep.subr.mxu0 0.0
    %195 = vmatpush2.msra.mxu0 0.0
    %196 = vmatprep.subr.mxu0 0.0
    %197 = vmatpush2.msra.mxu0 0.0
    %198 = vmatprep.subr.mxu0 0.0
    %199 = vmatpush2.msra.mxu0 0.0
    %200 = vmatprep.subr.mxu0 0.0
    %201 = vmatpush2.msra.mxu0 0.0
    %202 = vmatprep.subr.mxu0 0.0
    %203 = vmatpush2.msra.mxu0 0.0
    %204 = vmatprep.subr.mxu0 0.0
    %205 = vmatpush2.msra.mxu0 0.0
    %206 = vmatprep.subr.mxu0 0.0
    %207 = vmatpush2.msra.mxu0 0.0
    %208 = vmatprep.subr.mxu0 0.0
    %209 = vmatpush2.msra.mxu0 0.0
    %210 = vmatprep.subr.mxu0 0.0
    %211 = vmatpush2.msra.mxu0 0.0
    %212 = vmatprep.subr.mxu0 0.0
    %213 = vmatpush2.msra.mxu0 0.0
    %214 = vmatprep.subr.mxu0 0.0
    %215 = vmatpush2.msra.mxu0 0.0
    %216 = vmatprep.subr.mxu0 0.0
    %217 = vmatpush2.msra.mxu0 0.0
    %218 = vmatprep.subr.mxu0 0.0
    %219 = vmatpush2.msra.mxu0 0.0
    %220 = vmatprep.subr.mxu0 0.0
    %221 = vmatpush2.msra.mxu0 0.0
    %222 = vmatprep.subr.mxu0 0.0
    %223 = vmatpush2.msra.mxu0 0.0
    %224 = vmatprep.mubr.f32.mxu0 0.0
    %225 = vmatmul.mubr.f32.gmra.mxu0 %v138
    %v226 = vpop.f32.mrf.mxu0
    %v227 = vadd.f32 %v159, %v226
    %v228 = vpop.f32.mrf.mxu0
    %229 = vdwg.mxu0
    %v230 = vmax.f32 %v227, 0.0
    %v231 = vld [vmem:[#allocation2 + $0x98] sm:$0xff]
    %v232 = vld [vmem:[#allocation2 + $0xa0] sm:$0xff]
    %v233 = vld [vmem:[#allocation2 + $0xa8] sm:$0xff]
    %v234 = vld [vmem:[#allocation2 + $0xb0] sm:$0xff]
    %v235 = vld [vmem:[#allocation2 + $0xb8] sm:$0xff]
    %v236 = vld [vmem:[#allocation2 + $0xc0] sm:$0xff]
    %v237 = vld [vmem:[#allocation2 + $0xc8] sm:$0xff]
    %v238 = vld [vmem:[#allocation2 + $0xd0] sm:$0xff]
    %v239 = vld [vmem:[#allocation2 + $0xd8] sm:$0xff]
    %v240 = vld [vmem:[#allocation2 + $0xe0] sm:$0xff]
    %v241 = vld [vmem:[#allocation2 + $0xe8] sm:$0xff]
    %v242 = vld [vmem:[#allocation2 + $0xf0] sm:$0xff]
    %v243 = vld [vmem:[#allocation2 + $0xf8] sm:$0xff]
    %v244 = vld [vmem:[#allocation2 + $0x100] sm:$0xff]
    %v245 = vld [vmem:[#allocation2 + $0x108] sm:$0xff]
    %v246 = vld [vmem:[#allocation2 + $0x110] sm:$0xff]
    %v247 = vld [vmem:[#allocation4 + $0x2] sm:$0x1]
    %v248 = vlaneseq
    %v249 = vshrl.u32 %v248, 7
    %v250 = vsub.s32 0, %v249
    %v251 = vrot.slane %v247, %v250
    %252 = vmatprep.subr.mxu0 0.0
    %253 = vmatpush1.msra.mxu0 %v246
    %254 = vmatprep.subr.mxu0 0.0
    %255 = vmatpush1.msra.mxu0 %v245
    %256 = vmatprep.subr.mxu0 0.0
    %257 = vmatpush1.msra.mxu0 %v244
    %258 = vmatprep.subr.mxu0 0.0
    %259 = vmatpush1.msra.mxu0 %v243
    %260 = vmatprep.subr.mxu0 0.0
    %261 = vmatpush1.msra.mxu0 %v242
    %262 = vmatprep.subr.mxu0 0.0
    %263 = vmatpush1.msra.mxu0 %v241
    %264 = vmatprep.subr.mxu0 0.0
    %265 = vmatpush1.msra.mxu0 %v240
    %266 = vmatprep.subr.mxu0 0.0
    %267 = vmatpush1.msra.mxu0 %v239
    %268 = vmatprep.subr.mxu0 0.0
    %269 = vmatpush1.msra.mxu0 %v238
    %270 = vmatprep.subr.mxu0 0.0
    %271 = vmatpush1.msra.mxu0 %v237
    %272 = vmatprep.subr.mxu0 0.0
    %273 = vmatpush1.msra.mxu0 %v236
    %274 = vmatprep.subr.mxu0 0.0
    %275 = vmatpush1.msra.mxu0 %v235
    %276 = vmatprep.subr.mxu0 0.0
    %277 = vmatpush1.msra.mxu0 %v234
    %278 = vmatprep.subr.mxu0 0.0
    %279 = vmatpush1.msra.mxu0 %v233
    %280 = vmatprep.subr.mxu0 0.0
    %281 = vmatpush1.msra.mxu0 %v232
    %282 = vmatprep.subr.mxu0 0.0
    %283 = vmatpush1.msra.mxu0 %v231
    %284 = vmatprep.subr.mxu0 0.0
    %285 = vmatpush2.msra.mxu0 0.0
    %286 = vmatprep.subr.mxu0 0.0
    %287 = vmatpush2.msra.mxu0 0.0
    %288 = vmatprep.subr.mxu0 0.0
    %289 = vmatpush2.msra.mxu0 0.0
    %290 = vmatprep.subr.mxu0 0.0
    %291 = vmatpush2.msra.mxu0 0.0
    %292 = vmatprep.subr.mxu0 0.0
    %293 = vmatpush2.msra.mxu0 0.0
    %294 = vmatprep.subr.mxu0 0.0
    %295 = vmatpush2.msra.mxu0 0.0
    %296 = vmatprep.subr.mxu0 0.0
    %297 = vmatpush2.msra.mxu0 0.0
    %298 = vmatprep.subr.mxu0 0.0
    %299 = vmatpush2.msra.mxu0 0.0
    %300 = vmatprep.subr.mxu0 0.0
    %301 = vmatpush2.msra.mxu0 0.0
    %302 = vmatprep.subr.mxu0 0.0
    %303 = vmatpush2.msra.mxu0 0.0
    %304 = vmatprep.subr.mxu0 0.0
    %305 = vmatpush2.msra.mxu0 0.0
    %306 = vmatprep.subr.mxu0 0.0
    %307 = vmatpush2.msra.mxu0 0.0
    %308 = vmatprep.subr.mxu0 0.0
    %309 = vmatpush2.msra.mxu0 0.0
    %310 = vmatprep.subr.mxu0 0.0
    %311 = vmatpush2.msra.mxu0 0.0
    %312 = vmatprep.subr.mxu0 0.0
    %313 = vmatpush2.msra.mxu0 0.0
    %314 = vmatprep.subr.mxu0 0.0
    %315 = vmatpush2.msra.mxu0 0.0
    %316 = vmatprep.mubr.f32.mxu0 0.0
    %317 = vmatmul.mubr.f32.gmra.mxu0 %v230
    %v318 = vpop.f32.mrf.mxu0
    %v319 = vadd.f32 %v251, %v318
    %v320 = vpop.f32.mrf.mxu0
    %321 = vdwg.mxu0
    %v322 = vmax.f32 %v319, 0.0
    %v323 = vld [vmem:[#allocation2 + $0x118] sm:$0xff]
    %v324 = vld [vmem:[#allocation2 + $0x120] sm:$0xff]
    %v325 = vld [vmem:[#allocation2 + $0x128] sm:$0xff]
    %v326 = vld [vmem:[#allocation2 + $0x130] sm:$0xff]
    %v327 = vld [vmem:[#allocation2 + $0x138] sm:$0xff]
    %v328 = vld [vmem:[#allocation2 + $0x140] sm:$0xff]
    %v329 = vld [vmem:[#allocation2 + $0x148] sm:$0xff]
    %v330 = vld [vmem:[#allocation2 + $0x150] sm:$0xff]
    %v331 = vld [vmem:[#allocation2 + $0x158] sm:$0xff]
    %v332 = vld [vmem:[#allocation2 + $0x160] sm:$0xff]
    %v333 = vld [vmem:[#allocation2 + $0x168] sm:$0xff]
    %v334 = vld [vmem:[#allocation2 + $0x170] sm:$0xff]
    %v335 = vld [vmem:[#allocation2 + $0x178] sm:$0xff]
    %v336 = vld [vmem:[#allocation2 + $0x180] sm:$0xff]
    %v337 = vld [vmem:[#allocation2 + $0x188] sm:$0xff]
    %v338 = vld [vmem:[#allocation2 + $0x190] sm:$0xff]
    %v339 = vld [vmem:[#allocation4 + $0x3] sm:$0x1]
    %v340 = vlaneseq
    %v341 = vshrl.u32 %v340, 7
    %v342 = vsub.s32 0, %v341
    %v343 = vrot.slane %v339, %v342
    %344 = vmatprep.subr.mxu0 0.0
    %345 = vmatpush1.msra.mxu0 %v338
    %346 = vmatprep.subr.mxu0 0.0
    %347 = vmatpush1.msra.mxu0 %v337
    %348 = vmatprep.subr.mxu0 0.0
    %349 = vmatpush1.msra.mxu0 %v336
    %350 = vmatprep.subr.mxu0 0.0
    %351 = vmatpush1.msra.mxu0 %v335
    %352 = vmatprep.subr.mxu0 0.0
    %353 = vmatpush1.msra.mxu0 %v334
    %354 = vmatprep.subr.mxu0 0.0
    %355 = vmatpush1.msra.mxu0 %v333
    %356 = vmatprep.subr.mxu0 0.0
    %357 = vmatpush1.msra.mxu0 %v332
    %358 = vmatprep.subr.mxu0 0.0
    %359 = vmatpush1.msra.mxu0 %v331
    %360 = vmatprep.subr.mxu0 0.0
    %361 = vmatpush1.msra.mxu0 %v330
    %362 = vmatprep.subr.mxu0 0.0
    %363 = vmatpush1.msra.mxu0 %v329
    %364 = vmatprep.subr.mxu0 0.0
    %365 = vmatpush1.msra.mxu0 %v328
    %366 = vmatprep.subr.mxu0 0.0
    %367 = vmatpush1.msra.mxu0 %v327
    %368 = vmatprep.subr.mxu0 0.0
    %369 = vmatpush1.msra.mxu0 %v326
    %370 = vmatprep.subr.mxu0 0.0
    %371 = vmatpush1.msra.mxu0 %v325
    %372 = vmatprep.subr.mxu0 0.0
    %373 = vmatpush1.msra.mxu0 %v324
    %374 = vmatprep.subr.mxu0 0.0
    %375 = vmatpush1.msra.mxu0 %v323
    %376 = vmatprep.subr.mxu0 0.0
    %377 = vmatpush2.msra.mxu0 0.0
    %378 = vmatprep.subr.mxu0 0.0
    %379 = vmatpush2.msra.mxu0 0.0
    %380 = vmatprep.subr.mxu0 0.0
    %381 = vmatpush2.msra.mxu0 0.0
    %382 = vmatprep.subr.mxu0 0.0
    %383 = vmatpush2.msra.mxu0 0.0
    %384 = vmatprep.subr.mxu0 0.0
    %385 = vmatpush2.msra.mxu0 0.0
    %386 = vmatprep.subr.mxu0 0.0
    %387 = vmatpush2.msra.mxu0 0.0
    %388 = vmatprep.subr.mxu0 0.0
    %389 = vmatpush2.msra.mxu0 0.0
    %390 = vmatprep.subr.mxu0 0.0
    %391 = vmatpush2.msra.mxu0 0.0
    %392 = vmatprep.subr.mxu0 0.0
    %393 = vmatpush2.msra.mxu0 0.0
    %394 = vmatprep.subr.mxu0 0.0
    %395 = vmatpush2.msra.mxu0 0.0
    %396 = vmatprep.subr.mxu0 0.0
    %397 = vmatpush2.msra.mxu0 0.0
    %398 = vmatprep.subr.mxu0 0.0
    %399 = vmatpush2.msra.mxu0 0.0
    %400 = vmatprep.subr.mxu0 0.0
    %401 = vmatpush2.msra.mxu0 0.0
    %402 = vmatprep.subr.mxu0 0.0
    %403 = vmatpush2.msra.mxu0 0.0
    %404 = vmatprep.subr.mxu0 0.0
    %405 = vmatpush2.msra.mxu0 0.0
    %406 = vmatprep.subr.mxu0 0.0
    %407 = vmatpush2.msra.mxu0 0.0
    %408 = vmatprep.mubr.f32.mxu0 0.0
    %409 = vmatmul.mubr.f32.gmra.mxu0 %v322
    %v410 = vpop.f32.mrf.mxu0
    %v411 = vadd.f32 %v343, %v410
    %v412 = vpop.f32.mrf.mxu0
    %413 = vdwg.mxu0
    %414 = vst [vmem:[%s4] sm:$0xff] %v411
    // Predicated region
    $region26: #{forward.1} parent=1 // pred_check
      _
    $region27: #{forward.1} parent=1 // pred_check_branch
      %416 = sbr.rel (0) target = $region29
    $region28: #{forward.1} parent=1 // pred_region
      _
    $region29: #{forward.1} parent=1 // pred_fallthru
      _
    // Predicated region
    $region30: #{forward.1} parent=1 // pred_check
      _
    $region31: #{forward.1} parent=1 // pred_check_branch
      %418 = sbr.rel (0) target = $region33
    $region32: #{forward.1} parent=1 // pred_region
      _
    $region33: #{forward.1} parent=1 // pred_fallthru
      _
    %419 = vsyncpa [#allocation3], 1
    %420 = vsyncpa [#allocation5], 1

</llo_original>
